<compile_context>
chip_gen: v6e
topology: v6e:2x2x1
jax: 0.10.0
libtpu: 0.0.40
codegen_flags: <defaults>
</compile_context>

<pallas_src>
import jax
import jax.numpy as jnp
from jax.experimental import pallas as pl
from jax.experimental.pallas import tpu as pltpu


# ------------------------------ alias path -----------------------------------

def _identity_alias_kernel(x_ref, o_ref):
    # Output HBM buffer aliases the input buffer: nothing to compute or move.
    # (pltpu.touch(o_ref) could be used to pin ordering; no ordering is needed here.)
    del x_ref, o_ref


def _no_norm_alias(x):
    return pl.pallas_call(
        _identity_alias_kernel,
        out_shape=jax.ShapeDtypeStruct(x.shape, x.dtype),
        in_specs=[pl.BlockSpec(memory_space=pl.ANY)],
        out_specs=pl.BlockSpec(memory_space=pl.ANY),
        input_output_aliases={0: 0},
    )(x)


# ------------------------------ copy path -------------------------------------

def _identity_copy_kernel(x_ref, o_ref):
    o_ref[...] = x_ref[...]


_TARGET_BLOCK_BYTES = 4 * 1024 * 1024  # ~4 MiB per block


def _lane_dense_view(x):
    """Pick a (rows, cols) 2D view whose last dim is a large multiple of 128."""
    total = x.size
    for c in (4096, 2048, 1024, 512, 256, 128):
        if total % c == 0:
            return total // c, c
    # Fallback: natural 2D view (original last dim on the lane axis).
    if x.ndim >= 2:
        return total // x.shape[-1], x.shape[-1]
    return 1, total


def _no_norm_copy(x):
    orig_shape = x.shape
    itemsize = jnp.dtype(x.dtype).itemsize

    rows, cols = _lane_dense_view(x)
    x2 = x.reshape(rows, cols)

    # Column tile: full extent when small, else a 128-multiple chunk.
    max_tc = 2048 if itemsize >= 4 else 4096
    tc = cols if cols <= max_tc else max_tc

    # Row tile from the byte budget, rounded to the sublane-packing multiple.
    sublane = 8 * max(1, 4 // itemsize)  # 8 (f32) / 16 (bf16) / 32 (int8)
    budget_rows = max(sublane, _TARGET_BLOCK_BYTES // max(1, tc * itemsize))
    budget_rows = (budget_rows // sublane) * sublane
    tr = rows if rows <= budget_rows else budget_rows

    grid = (pl.cdiv(rows, tr), pl.cdiv(cols, tc))

    out2 = pl.pallas_call(
        _identity_copy_kernel,
        out_shape=jax.ShapeDtypeStruct((rows, cols), x.dtype),
        grid=grid,
        in_specs=[pl.BlockSpec((tr, tc), lambda i, j: (i, j))],
        out_specs=pl.BlockSpec((tr, tc), lambda i, j: (i, j)),
        compiler_params=pltpu.CompilerParams(
            dimension_semantics=("parallel", "parallel"),
            vmem_limit_bytes=32 * 1024 * 1024,
        ),
        cost_estimate=pl.CostEstimate(
            flops=0, transcendentals=0, bytes_accessed=2 * x.size * itemsize
        ),
    )(x2)

    return out2.reshape(orig_shape)


# ------------------------------ public wrapper --------------------------------

def no_norm(x, *, alias=True):
    """NoNorm forward pass (identity).

    alias=True  -> output aliases the input buffer (zero HBM traffic when donated).
    alias=False -> materialize a fresh copy via a tiled, lane-dense Pallas VMEM copy.
    """
    if x.size == 0:
        return x
    if alias:
        return _no_norm_alias(x)
    return _no_norm_copy(x)


if __name__ == "__main__":
    key = jax.random.PRNGKey(0)
    # Small NCHW-like input consistent with a norm layer's typical usage.
    x = jax.random.normal(key, (2, 4, 16, 16), dtype=jnp.float32)

    # Default aliasing path.
    y = jax.block_until_ready(no_norm(x))
    assert y.shape == x.shape and y.dtype == x.dtype
    assert bool(jnp.all(y == x))

    # Explicit materializing copy path.
    y2 = jax.block_until_ready(no_norm(x, alias=False))
    assert y2.shape == x.shape and y2.dtype == x.dtype
    assert bool(jnp.all(y2 == x))

    print("KERNEL_OK")
</pallas_src>

<mosaic_0001>
module attributes {stable_mosaic.version = 11 : i64} {
  func.func @_identity_alias_kernel(%arg0: memref<2x4x16x16xf32, #tpu.memory_space<any>>, %arg1: memref<2x4x16x16xf32, #tpu.memory_space<any>>) attributes {dimension_semantics = [], scalar_prefetch = 0 : i64, scratch_operands = 0 : i64, tpu.core_type = #tpu.core_type<tc>} {
    return
  }
}

</mosaic_0001>

<llo_original>
// kernel: tpu_custom_call.1
$region0: #{tpu_custom_call.1}
  #allocation0 [shape = 'u32[]', space=smem, size = 0x4, offset = 0x4, fixed_abs, tag = 'smem constant byte address 0x4 - core index']
  #allocation1 [shape = 'u32[144,128]{1,0:T(1,128)}', space=vmem, size = 0x12000, scoped, tag = 'internal scratch']
  %s0 = inlined_call_operand.hbm [shape: f32[2,4,16,16], index: 0, kind: input, shape index: {}, may-alias: {0,1}]
  %s1 = inlined_call_operand.hbm [shape: f32[2,4,16,16], index: 1, kind: output, shape index: {}, may-alias: {0,1}]
  %s2 = sld [smem:[#allocation0]]
  $region2: #{tpu_custom_call.1} parent=0
    _
  %s4 = ssub.s32 1, %s2
  %s5 = scalar_select 0, %s4, %s2

</llo_original>
